<compile_context>
chip_gen: v7x
topology: tpu7x:2x2x1
jax: 0.10.0
libtpu: 0.0.40
codegen_flags: <defaults>
</compile_context>

<pallas_src>
import jax
import jax.numpy as jnp
from jax.experimental import pallas as pl
from jax.experimental.pallas import tpu as pltpu


def _round_up(x, m):
    return (x + m - 1) // m * m


def _vmem_caps():
    """(physical VMEM bytes, usable budget) for the current TPU generation."""
    try:
        cap = int(pltpu.get_tpu_info().vmem_capacity_bytes)
    except Exception:
        cap = 64 << 20                      # be conservative: assume v7x (64 MiB / TC)
    return cap, (cap * 3) // 4              # ~96 MiB on v5e/v6e, ~48 MiB on v7x


def _num_tensorcores():
    """Best-effort TensorCore count of the local device (v7x has 2)."""
    try:
        n = getattr(jax.devices()[0], "num_cores", None)
        return int(n) if n else 1
    except Exception:
        return 1


def _pad_cast(a, shape, dtype):
    """Cast + zero-pad `a` to `shape`, skipping the HBM round-trip when already right."""
    if a.dtype != jnp.dtype(dtype):
        a = a.astype(dtype)
    if a.shape == tuple(shape):
        return a
    return jnp.pad(a, [(0, t - s) for s, t in zip(a.shape, shape)])


# ---------------------------------------------------------------------------
# Kernels
# ---------------------------------------------------------------------------

def _sae_kernel_flat(x_ref, we_ref, be_ref, wd_ref, bd_ref, enc_ref, dec_ref):
    """Weight-resident path: both weight matrices live in VMEM across batch tiles."""
    x = x_ref[...]
    pre_enc = jnp.dot(x, we_ref[...], preferred_element_type=jnp.float32) + be_ref[...]
    enc = jax.nn.sigmoid(pre_enc)                                     # f32 VPU/EUP path
    enc_ref[...] = enc.astype(enc_ref.dtype)

    pre_dec = jnp.dot(enc.astype(wd_ref.dtype), wd_ref[...],
                      preferred_element_type=jnp.float32) + bd_ref[...]
    dec_ref[...] = jax.nn.sigmoid(pre_dec).astype(dec_ref.dtype)


def _sae_kernel_htiled(x_ref, we_ref, be_ref, wd_ref, bd_ref, enc_ref, dec_ref, acc_ref):
    """H-tiled path: stream W_enc column / W_dec row tiles, accumulate decoder in f32."""
    h = pl.program_id(1)

    @pl.when(h == 0)
    def _():
        acc_ref[...] = jnp.zeros_like(acc_ref)

    x = x_ref[...]
    pre_enc = jnp.dot(x, we_ref[...], preferred_element_type=jnp.float32) + be_ref[...]
    enc = jax.nn.sigmoid(pre_enc)
    enc_ref[...] = enc.astype(enc_ref.dtype)

    acc_ref[...] += jnp.dot(enc.astype(wd_ref.dtype), wd_ref[...],
                            preferred_element_type=jnp.float32)

    @pl.when(h == pl.num_programs(1) - 1)
    def _():
        dec_ref[...] = jax.nn.sigmoid(acc_ref[...] + bd_ref[...]).astype(dec_ref.dtype)


# ---------------------------------------------------------------------------
# Wrapper
# ---------------------------------------------------------------------------

def sparse_autoencoder_forward(x, w_enc, b_enc, w_dec, b_dec, *,
                               batch_block=256, hidden_block=None,
                               matmul_dtype=jnp.bfloat16, encoded_dtype=None):
    """Forward pass of the SparseAutoEncoder.

    x: (B, D); w_enc: (D, H); b_enc: (H,); w_dec: (H, D); b_dec: (D,).
    Weights are stored pre-transposed as (in_features, out_features).
    Returns (encoded (B, H), decoded (B, D)).

    hidden_block=None  -> pick flat (weight-resident) vs H-tiled path automatically.
    hidden_block=int   -> force the H-tiled streaming path with that tile size.
    matmul_dtype       -> MXU operand dtype (bf16 default; float32 for exact semantics;
                          fp8 dtypes may be passed on v7x).
    encoded_dtype      -> dtype of the `encoded` output (default: x.dtype; bf16 halves
                          the enc HBM writeback when H >> D).
    """
    B, D = x.shape
    D2, H = w_enc.shape
    assert D2 == D and w_dec.shape == (H, D) and b_enc.shape == (H,) and b_dec.shape == (D,)

    out_dtype = x.dtype
    enc_dtype = jnp.dtype(encoded_dtype) if encoded_dtype is not None else jnp.dtype(out_dtype)
    mdt = jnp.dtype(matmul_dtype)
    enc_bytes = enc_dtype.itemsize
    dec_bytes = jnp.dtype(out_dtype).itemsize

    # Packed-sublane granularity for the MXU operand dtype (8 f32, 16 bf16, 32 fp8/int8).
    sublane = max(8, 32 // mdt.itemsize)
    Dp = _round_up(D, 128)

    vmem_cap, vmem_budget = _vmem_caps()

    # --- VMEM need estimates (include kernel-internal f32 temporaries + headroom) -----
    def _flat_needed(tb, hp):
        weights = (Dp * hp + hp * Dp) * mdt.itemsize + (hp + Dp) * 4      # single-buffered
        streams = 2 * (tb * Dp * mdt.itemsize + tb * hp * enc_bytes + tb * Dp * dec_bytes)
        temps = tb * hp * (8 + mdt.itemsize) + tb * Dp * 4                # pre_enc/enc/cast/pre_dec
        return weights + streams + temps + (4 << 20)

    def _tiled_needed(tb, th):
        weights = 2 * (Dp * th + th * Dp) * mdt.itemsize + 2 * th * 4 + Dp * 4
        streams = 2 * (tb * Dp * mdt.itemsize + tb * th * enc_bytes + tb * Dp * dec_bytes)
        scratch = tb * Dp * 4                                             # f32 accumulator
        temps = tb * th * (8 + mdt.itemsize) + tb * Dp * 4
        return weights + streams + scratch + temps + (4 << 20)

    # --- batch tile --------------------------------------------------------------------
    if B >= batch_block:
        TB = batch_block
    else:
        TB = _round_up(B, sublane)
    # Give a second TensorCore (v7x) work: need >= 2 batch tiles on the "parallel" axis.
    if _num_tensorcores() >= 2 and _round_up(B, TB) // TB < 2 and B >= 2 * sublane:
        TB = _round_up((B + 1) // 2, sublane)

    # --- path selection ------------------------------------------------------------------
    Hp_flat = _round_up(H, 128)
    use_tiled = (hidden_block is not None) or (_flat_needed(TB, Hp_flat) > vmem_budget)

    if use_tiled:
        if hidden_block is not None:
            TH = min(_round_up(int(hidden_block), 128), _round_up(H, 128))
        else:
            TH = 128
            for cand in (2048, 1024, 512, 256, 128):
                if cand <= _round_up(H, 128) and _tiled_needed(TB, cand) <= vmem_budget:
                    TH = cand
                    break
            while _tiled_needed(TB, TH) > vmem_budget and TB > sublane:
                TB = max(sublane, _round_up(TB // 2, sublane))
            # TODO(synk): if even (TB=sublane, TH=128) exceeds VMEM (enormous input_size),
            # a D-tiling grid axis over W_dec columns / the decoder output would be needed.
        Hp = _round_up(H, TH)
        needed = _tiled_needed(TB, TH)
    else:
        TH = None
        Hp = Hp_flat
        needed = _flat_needed(TB, Hp)

    Bp = _round_up(B, TB)
    grid_b = Bp // TB
    vmem_limit = int(min(max(needed, vmem_budget), vmem_cap - (2 << 20)))

    # --- padding / casting (skipped when already lane-dense and right dtype) ------------
    xp = _pad_cast(x, (Bp, Dp), mdt)
    wep = _pad_cast(w_enc, (Dp, Hp), mdt)
    bep = _pad_cast(b_enc.reshape(1, H), (1, Hp), jnp.float32)
    wdp = _pad_cast(w_dec, (Hp, Dp), mdt)
    bdp = _pad_cast(b_dec.reshape(1, D), (1, Dp), jnp.float32)

    # --- scheduling hint for XLA around the custom call ---------------------------------
    flops = 2 * Bp * (Dp * Hp + Hp * Dp)
    transcendentals = Bp * (Hp + Dp)                       # one exp per sigmoid output
    bytes_accessed = (xp.size * mdt.itemsize
                      + (wep.size + wdp.size) * mdt.itemsize
                      + (bep.size + bdp.size) * 4
                      + Bp * Hp * enc_bytes + Bp * Dp * dec_bytes)

    out_shape = (jax.ShapeDtypeStruct((Bp, Hp), enc_dtype),
                 jax.ShapeDtypeStruct((Bp, Dp), out_dtype))

    def _run(single_buffer_consts):
        const_kw = {}
        if single_buffer_consts and hasattr(pl, "Buffered"):
            # Constant-index blocks are fetched exactly once: a second buffer is waste.
            const_kw = dict(pipeline_mode=pl.Buffered(1))

        if use_tiled:
            grid = (grid_b, Hp // TH)
            kernel = _sae_kernel_htiled
            in_specs = [
                pl.BlockSpec((TB, Dp), lambda i, h: (i, 0)),            # x (reused over h)
                pl.BlockSpec((Dp, TH), lambda i, h: (0, h)),            # W_enc column tile
                pl.BlockSpec((1, TH), lambda i, h: (0, h)),             # b_enc tile
                pl.BlockSpec((TH, Dp), lambda i, h: (h, 0)),            # W_dec row tile
                pl.BlockSpec((1, Dp), lambda i, h: (0, 0), **const_kw), # b_dec (resident)
            ]
            out_specs = (
                pl.BlockSpec((TB, TH), lambda i, h: (i, h)),            # enc per h-block
                pl.BlockSpec((TB, Dp), lambda i, h: (i, 0)),            # dec (written @ last h)
            )
            scratch = [pltpu.VMEM((TB, Dp), jnp.float32)]
            semantics = ("parallel", "arbitrary")
        else:
            grid = (grid_b,)
            kernel = _sae_kernel_flat
            in_specs = [
                pl.BlockSpec((TB, Dp), lambda i: (i, 0)),               # x: streamed
                pl.BlockSpec((Dp, Hp), lambda i: (0, 0), **const_kw),   # W_enc: resident
                pl.BlockSpec((1, Hp), lambda i: (0, 0), **const_kw),    # b_enc
                pl.BlockSpec((Hp, Dp), lambda i: (0, 0), **const_kw),   # W_dec: resident
                pl.BlockSpec((1, Dp), lambda i: (0, 0), **const_kw),    # b_dec
            ]
            out_specs = (
                pl.BlockSpec((TB, Hp), lambda i: (i, 0)),
                pl.BlockSpec((TB, Dp), lambda i: (i, 0)),
            )
            scratch = []
            semantics = ("parallel",)

        out = pl.pallas_call(
            kernel,
            out_shape=out_shape,
            grid=grid,
            in_specs=in_specs,
            out_specs=out_specs,
            scratch_shapes=scratch,
            compiler_params=pltpu.CompilerParams(
                dimension_semantics=semantics,
                vmem_limit_bytes=vmem_limit),
            cost_estimate=pl.CostEstimate(
                flops=flops, transcendentals=transcendentals,
                bytes_accessed=bytes_accessed),
        )(xp, wep, bep, wdp, bdp)
        return jax.block_until_ready(out)

    try:
        enc_p, dec_p = _run(True)
    except Exception:
        # pipeline_mode=pl.Buffered(1) not supported on this jax build -> default buffering.
        enc_p, dec_p = _run(False)

    # Strip the padding.
    return enc_p[:B, :H], dec_p[:B, :D]


def _reference(x, w_enc, b_enc, w_dec, b_dec):
    enc = jax.nn.sigmoid(x @ w_enc + b_enc)
    dec = jax.nn.sigmoid(enc @ w_dec + b_dec)
    return enc, dec


if __name__ == "__main__":
    key = jax.random.PRNGKey(0)

    def init_params(k, input_size, hidden_size):
        k1, k2, k3, k4 = jax.random.split(k, 4)
        be = 1.0 / (input_size ** 0.5)
        bd = 1.0 / (hidden_size ** 0.5)
        w_enc = jax.random.uniform(k1, (input_size, hidden_size),
                                   minval=-be, maxval=be, dtype=jnp.float32)
        b_enc = jax.random.uniform(k2, (hidden_size,),
                                   minval=-be, maxval=be, dtype=jnp.float32)
        w_dec = jax.random.uniform(k3, (hidden_size, input_size),
                                   minval=-bd, maxval=bd, dtype=jnp.float32)
        b_dec = jax.random.uniform(k4, (input_size,),
                                   minval=-bd, maxval=bd, dtype=jnp.float32)
        return w_enc, b_enc, w_dec, b_dec

    kx1, kp1, kx2, kp2 = jax.random.split(key, 4)

    # --- Config 1: small SAE (batch=80, input=64, hidden=32) -> weight-resident path ----
    batch, input_size, hidden_size = 80, 64, 32
    x = jax.random.normal(kx1, (batch, input_size), dtype=jnp.float32)
    w_enc, b_enc, w_dec, b_dec = init_params(kp1, input_size, hidden_size)

    # Exact path (f32 MXU operands) — matches PyTorch f32 semantics tightly.
    enc32, dec32 = sparse_autoencoder_forward(
        x, w_enc, b_enc, w_dec, b_dec, matmul_dtype=jnp.float32)
    # Fast path (bf16 MXU operands, f32 accumulation) — default deployment config.
    enc16, dec16 = sparse_autoencoder_forward(x, w_enc, b_enc, w_dec, b_dec)
    jax.block_until_ready((enc32, dec32, enc16, dec16))

    enc_ref, dec_ref = _reference(x, w_enc, b_enc, w_dec, b_dec)
    assert enc32.shape == (batch, hidden_size) and dec32.shape == (batch, input_size)
    assert enc16.shape == (batch, hidden_size) and dec16.shape == (batch, input_size)
    assert jnp.allclose(enc32, enc_ref, atol=1e-5, rtol=1e-5)
    assert jnp.allclose(dec32, dec_ref, atol=1e-5, rtol=1e-5)
    assert jnp.allclose(enc16, enc_ref, atol=2e-2)
    assert jnp.allclose(dec16, dec_ref, atol=2e-2)

    # --- Config 2: wider hidden layer, force the H-tiled streaming path (3 h-tiles) -----
    hidden2 = 320
    x2 = jax.random.normal(kx2, (batch, input_size), dtype=jnp.float32)
    w_enc2, b_enc2, w_dec2, b_dec2 = init_params(kp2, input_size, hidden2)
    enc_t, dec_t = sparse_autoencoder_forward(
        x2, w_enc2, b_enc2, w_dec2, b_dec2, matmul_dtype=jnp.float32, hidden_block=128)
    jax.block_until_ready((enc_t, dec_t))

    enc_ref2, dec_ref2 = _reference(x2, w_enc2, b_enc2, w_dec2, b_dec2)
    assert enc_t.shape == (batch, hidden2) and dec_t.shape == (batch, input_size)
    assert jnp.allclose(enc_t, enc_ref2, atol=1e-5, rtol=1e-5)
    assert jnp.allclose(dec_t, dec_ref2, atol=1e-5, rtol=1e-5)

    print("KERNEL_OK")
</pallas_src>

<mosaic_0001>
module attributes {stable_mosaic.version = 11 : i64} {
  func.func @_sae_kernel_flat(%arg0: i32, %arg1: memref<80x128xf32, #tpu.memory_space<vmem>>, %arg2: memref<128x128xf32, #tpu.memory_space<vmem>>, %arg3: memref<1x128xf32, #tpu.memory_space<vmem>>, %arg4: memref<128x128xf32, #tpu.memory_space<vmem>>, %arg5: memref<1x128xf32, #tpu.memory_space<vmem>>, %arg6: memref<80x128xf32, #tpu.memory_space<vmem>>, %arg7: memref<80x128xf32, #tpu.memory_space<vmem>>) attributes {dimension_semantics = [#tpu.dimension_semantics<parallel>], iteration_bounds = array<i64: 1>, scalar_prefetch = 0 : i64, scratch_operands = 0 : i64, tpu.core_type = #tpu.core_type<tc>, window_params = [{transform_indices = @transform_0, window_bounds = array<i64: 80, 128>}, {pipeline_mode = #tpu.pipeline_mode<synchronous>, transform_indices = @transform_1, window_bounds = array<i64: 128, 128>}, {pipeline_mode = #tpu.pipeline_mode<synchronous>, transform_indices = @transform_2, window_bounds = array<i64: 1, 128>}, {pipeline_mode = #tpu.pipeline_mode<synchronous>, transform_indices = @transform_3, window_bounds = array<i64: 128, 128>}, {pipeline_mode = #tpu.pipeline_mode<synchronous>, transform_indices = @transform_4, window_bounds = array<i64: 1, 128>}, {transform_indices = @transform_5, window_bounds = array<i64: 80, 128>}, {transform_indices = @transform_6, window_bounds = array<i64: 80, 128>}]} {
    %c0 = arith.constant 0 : index
    %c0_0 = arith.constant 0 : index
    %0 = vector.load %arg1[%c0, %c0_0] : memref<80x128xf32, #tpu.memory_space<vmem>>, vector<80x128xf32>
    %c0_1 = arith.constant 0 : index
    %c0_2 = arith.constant 0 : index
    %1 = vector.load %arg2[%c0_1, %c0_2] : memref<128x128xf32, #tpu.memory_space<vmem>>, vector<128x128xf32>
    %cst = arith.constant dense<0.000000e+00> : vector<80x128xf32>
    %2 = tpu.matmul %0, %1, %cst {dimension_numbers = #tpu.dot_dimension_numbers<[1], [0], [0], [1], [0, 0, 1, 1], [], []>} : vector<80x128xf32>, vector<128x128xf32>, vector<80x128xf32> -> vector<80x128xf32>
    %c0_3 = arith.constant 0 : index
    %c0_4 = arith.constant 0 : index
    %3 = vector.load %arg3[%c0_3, %c0_4] : memref<1x128xf32, #tpu.memory_space<vmem>>, vector<1x128xf32>
    %4 = vector.broadcast %3 : vector<1x128xf32> to vector<80x128xf32>
    %5 = arith.addf %2, %4 : vector<80x128xf32>
    %6 = arith.negf %5 : vector<80x128xf32>
    %7 = math.exp %6 : vector<80x128xf32>
    %cst_5 = arith.constant 1.000000e+00 : f32
    %8 = vector.broadcast %cst_5 : f32 to vector<80x128xf32>
    %9 = arith.addf %8, %7 : vector<80x128xf32>
    %10 = arith.divf %8, %9 : vector<80x128xf32>
    %c0_6 = arith.constant 0 : index
    %c0_7 = arith.constant 0 : index
    %11 = vector.load %arg6[%c0_6, %c0_7] : memref<80x128xf32, #tpu.memory_space<vmem>>, vector<80x128xf32>
    tpu.vector_store %arg6[%c0_6, %c0_7], %10 {strides = array<i32>} : memref<80x128xf32, #tpu.memory_space<vmem>>, vector<80x128xf32>,
    %c0_8 = arith.constant 0 : index
    %c0_9 = arith.constant 0 : index
    %12 = vector.load %arg4[%c0_8, %c0_9] : memref<128x128xf32, #tpu.memory_space<vmem>>, vector<128x128xf32>
    %cst_10 = arith.constant dense<0.000000e+00> : vector<80x128xf32>
    %13 = tpu.matmul %10, %12, %cst_10 {dimension_numbers = #tpu.dot_dimension_numbers<[1], [0], [0], [1], [0, 0, 1, 1], [], []>} : vector<80x128xf32>, vector<128x128xf32>, vector<80x128xf32> -> vector<80x128xf32>
    %c0_11 = arith.constant 0 : index
    %c0_12 = arith.constant 0 : index
    %14 = vector.load %arg5[%c0_11, %c0_12] : memref<1x128xf32, #tpu.memory_space<vmem>>, vector<1x128xf32>
    %15 = vector.broadcast %14 : vector<1x128xf32> to vector<80x128xf32>
    %16 = arith.addf %13, %15 : vector<80x128xf32>
    %17 = arith.negf %16 : vector<80x128xf32>
    %18 = math.exp %17 : vector<80x128xf32>
    %cst_13 = arith.constant 1.000000e+00 : f32
    %19 = vector.broadcast %cst_13 : f32 to vector<80x128xf32>
    %20 = arith.addf %19, %18 : vector<80x128xf32>
    %21 = arith.divf %19, %20 : vector<80x128xf32>
    %c0_14 = arith.constant 0 : index
    %c0_15 = arith.constant 0 : index
    %22 = vector.load %arg7[%c0_14, %c0_15] : memref<80x128xf32, #tpu.memory_space<vmem>>, vector<80x128xf32>
    tpu.vector_store %arg7[%c0_14, %c0_15], %21 {strides = array<i32>} : memref<80x128xf32, #tpu.memory_space<vmem>>, vector<80x128xf32>,
    return
  }
  func.func @transform_0(%arg0: i32) -> (i32, i32) {
    %c0_i32 = arith.constant 0 : i32
    %c0_i32_0 = arith.constant 0 : i32
    return %arg0, %c0_i32 : i32, i32
  }
  func.func @transform_1(%arg0: i32) -> (i32, i32) {
    %c0_i32 = arith.constant 0 : i32
    %c0_i32_0 = arith.constant 0 : i32
    %c0_i32_1 = arith.constant 0 : i32
    return %c0_i32, %c0_i32_0 : i32, i32
  }
  func.func @transform_2(%arg0: i32) -> (i32, i32) {
    %c0_i32 = arith.constant 0 : i32
    %c0_i32_0 = arith.constant 0 : i32
    %c0_i32_1 = arith.constant 0 : i32
    return %c0_i32, %c0_i32_0 : i32, i32
  }
  func.func @transform_3(%arg0: i32) -> (i32, i32) {
    %c0_i32 = arith.constant 0 : i32
    %c0_i32_0 = arith.constant 0 : i32
    %c0_i32_1 = arith.constant 0 : i32
    return %c0_i32, %c0_i32_0 : i32, i32
  }
  func.func @transform_4(%arg0: i32) -> (i32, i32) {
    %c0_i32 = arith.constant 0 : i32
    %c0_i32_0 = arith.constant 0 : i32
    %c0_i32_1 = arith.constant 0 : i32
    return %c0_i32, %c0_i32_0 : i32, i32
  }
  func.func @transform_5(%arg0: i32) -> (i32, i32) {
    %c0_i32 = arith.constant 0 : i32
    %c0_i32_0 = arith.constant 0 : i32
    return %arg0, %c0_i32 : i32, i32
  }
  func.func @transform_6(%arg0: i32) -> (i32, i32) {
    %c0_i32 = arith.constant 0 : i32
    %c0_i32_0 = arith.constant 0 : i32
    return %arg0, %c0_i32 : i32, i32
  }
}

module attributes {stable_mosaic.version = 11 : i64} {
  func.func @_sae_kernel_flat(%arg0: i32, %arg1: memref<80x128xf32, #tpu.memory_space<vmem>>, %arg2: memref<128x128xf32, #tpu.memory_space<vmem>>, %arg3: memref<1x128xf32, #tpu.memory_space<vmem>>, %arg4: memref<128x128xf32, #tpu.memory_space<vmem>>, %arg5: memref<1x128xf32, #tpu.memory_space<vmem>>, %arg6: memref<80x128xf32, #tpu.memory_space<vmem>>, %arg7: memref<80x128xf32, #tpu.memory_space<vmem>>) attributes {dimension_semantics = [#tpu.dimension_semantics<parallel>], iteration_bounds = array<i64: 1>, scalar_prefetch = 0 : i64, scratch_operands = 0 : i64, tpu.core_type = #tpu.core_type<tc>, window_params = [{transform_indices = @transform_0, window_bounds = array<i64: 80, 128>}, {pipeline_mode = #tpu.pipeline_mode<synchronous>, transform_indices = @transform_1, window_bounds = array<i64: 128, 128>}, {pipeline_mode = #tpu.pipeline_mode<synchronous>, transform_indices = @transform_2, window_bounds = array<i64: 1, 128>}, {pipeline_mode = #tpu.pipeline_mode<synchronous>, transform_indices = @transform_3, window_bounds = array<i64: 128, 128>}, {pipeline_mode = #tpu.pipeline_mode<synchronous>, transform_indices = @transform_4, window_bounds = array<i64: 1, 128>}, {transform_indices = @transform_5, window_bounds = array<i64: 80, 128>}, {transform_indices = @transform_6, window_bounds = array<i64: 80, 128>}]} {
    %c0 = arith.constant 0 : index
    %c0_0 = arith.constant 0 : index
    %0 = vector.load %arg1[%c0, %c0_0] : memref<80x128xf32, #tpu.memory_space<vmem>>, vector<80x128xf32>
    %c0_1 = arith.constant 0 : index
    %c0_2 = arith.constant 0 : index
    %1 = vector.load %arg2[%c0_1, %c0_2] : memref<128x128xf32, #tpu.memory_space<vmem>>, vector<128x128xf32>
    %cst = arith.constant dense<0.000000e+00> : vector<80x128xf32>
    %2 = tpu.matmul %0, %1, %cst {dimension_numbers = #tpu.dot_dimension_numbers<[1], [0], [0], [1], [0, 0, 1, 1], [], []>} : vector<80x128xf32>, vector<128x128xf32>, vector<80x128xf32> -> vector<80x128xf32>
    %c0_3 = arith.constant 0 : index
    %c0_4 = arith.constant 0 : index
    %3 = vector.load %arg3[%c0_3, %c0_4] : memref<1x128xf32, #tpu.memory_space<vmem>>, vector<1x128xf32>
    %4 = vector.broadcast %3 : vector<1x128xf32> to vector<80x128xf32>
    %5 = arith.addf %2, %4 : vector<80x128xf32>
    %6 = arith.negf %5 : vector<80x128xf32>
    %7 = math.exp %6 : vector<80x128xf32>
    %cst_5 = arith.constant 1.000000e+00 : f32
    %8 = vector.broadcast %cst_5 : f32 to vector<80x128xf32>
    %9 = arith.addf %8, %7 : vector<80x128xf32>
    %10 = arith.divf %8, %9 : vector<80x128xf32>
    %c0_6 = arith.constant 0 : index
    %c0_7 = arith.constant 0 : index
    %11 = vector.load %arg6[%c0_6, %c0_7] : memref<80x128xf32, #tpu.memory_space<vmem>>, vector<80x128xf32>
    tpu.vector_store %arg6[%c0_6, %c0_7], %10 {strides = array<i32>} : memref<80x128xf32, #tpu.memory_space<vmem>>, vector<80x128xf32>,
    %c0_8 = arith.constant 0 : index
    %c0_9 = arith.constant 0 : index
    %12 = vector.load %arg4[%c0_8, %c0_9] : memref<128x128xf32, #tpu.memory_space<vmem>>, vector<128x128xf32>
    %cst_10 = arith.constant dense<0.000000e+00> : vector<80x128xf32>
    %13 = tpu.matmul %10, %12, %cst_10 {dimension_numbers = #tpu.dot_dimension_numbers<[1], [0], [0], [1], [0, 0, 1, 1], [], []>} : vector<80x128xf32>, vector<128x128xf32>, vector<80x128xf32> -> vector<80x128xf32>
    %c0_11 = arith.constant 0 : index
    %c0_12 = arith.constant 0 : index
    %14 = vector.load %arg5[%c0_11, %c0_12] : memref<1x128xf32, #tpu.memory_space<vmem>>, vector<1x128xf32>
    %15 = vector.broadcast %14 : vector<1x128xf32> to vector<80x128xf32>
    %16 = arith.addf %13, %15 : vector<80x128xf32>
    %17 = arith.negf %16 : vector<80x128xf32>
    %18 = math.exp %17 : vector<80x128xf32>
    %cst_13 = arith.constant 1.000000e+00 : f32
    %19 = vector.broadcast %cst_13 : f32 to vector<80x128xf32>
    %20 = arith.addf %19, %18 : vector<80x128xf32>
    %21 = arith.divf %19, %20 : vector<80x128xf32>
    %c0_14 = arith.constant 0 : index
    %c0_15 = arith.constant 0 : index
    %22 = vector.load %arg7[%c0_14, %c0_15] : memref<80x128xf32, #tpu.memory_space<vmem>>, vector<80x128xf32>
    tpu.vector_store %arg7[%c0_14, %c0_15], %21 {strides = array<i32>} : memref<80x128xf32, #tpu.memory_space<vmem>>, vector<80x128xf32>,
    return
  }
  func.func @transform_0(%arg0: i32) -> (i32, i32) {
    %c0_i32 = arith.constant 0 : i32
    %c0_i32_0 = arith.constant 0 : i32
    return %arg0, %c0_i32 : i32, i32
  }
  func.func @transform_1(%arg0: i32) -> (i32, i32) {
    %c0_i32 = arith.constant 0 : i32
    %c0_i32_0 = arith.constant 0 : i32
    %c0_i32_1 = arith.constant 0 : i32
    return %c0_i32, %c0_i32_0 : i32, i32
  }
  func.func @transform_2(%arg0: i32) -> (i32, i32) {
    %c0_i32 = arith.constant 0 : i32
    %c0_i32_0 = arith.constant 0 : i32
    %c0_i32_1 = arith.constant 0 : i32
    return %c0_i32, %c0_i32_0 : i32, i32
  }
  func.func @transform_3(%arg0: i32) -> (i32, i32) {
    %c0_i32 = arith.constant 0 : i32
    %c0_i32_0 = arith.constant 0 : i32
    %c0_i32_1 = arith.constant 0 : i32
    return %c0_i32, %c0_i32_0 : i32, i32
  }
  func.func @transform_4(%arg0: i32) -> (i32, i32) {
    %c0_i32 = arith.constant 0 : i32
    %c0_i32_0 = arith.constant 0 : i32
    %c0_i32_1 = arith.constant 0 : i32
    return %c0_i32, %c0_i32_0 : i32, i32
  }
  func.func @transform_5(%arg0: i32) -> (i32, i32) {
    %c0_i32 = arith.constant 0 : i32
    %c0_i32_0 = arith.constant 0 : i32
    return %arg0, %c0_i32 : i32, i32
  }
  func.func @transform_6(%arg0: i32) -> (i32, i32) {
    %c0_i32 = arith.constant 0 : i32
    %c0_i32_0 = arith.constant 0 : i32
    return %arg0, %c0_i32 : i32, i32
  }
}

</mosaic_0001>

<llo_original>
// kernel: tpu_custom_call.1
$region0: #{tpu_custom_call.1}
  #allocation0 [shape = 'u32[]', space=smem, size = 0x4, offset = 0x4, fixed_abs, tag = 'smem constant byte address 0x4 - core index']
  #allocation1 [shape = 'u32[144,128]{1,0:T(1,128)}', space=vmem, size = 0x12000, scoped, tag = 'internal scratch']
  %s0 = inlined_call_operand.hbm [shape: f32[80,128], index: 0, kind: input, shape index: {}]
  %s1 = inlined_call_operand.hbm [shape: f32[128,128], index: 1, kind: input, shape index: {}]
  %s2 = inlined_call_operand.vmem [shape: f32[1,128], index: 2, kind: input, shape index: {}]
  %s3 = inlined_call_operand.hbm [shape: f32[128,128], index: 3, kind: input, shape index: {}]
  %s4 = inlined_call_operand.vmem [shape: f32[1,128], index: 4, kind: input, shape index: {}]
  %s5 = inlined_call_operand.hbm [shape: f32[80,128], index: 5, kind: output, shape index: {0}]
  %s6 = inlined_call_operand.hbm [shape: f32[80,128], index: 6, kind: output, shape index: {1}]
  %7 = xla_tuple %s5, %s6
  %s8 = sld [smem:[#allocation0]]
  $region50: #{tpu_custom_call.1} parent=0
    _
  %s10 = ssub.s32 1, %s8
  %s11 = scalar_select 0, %s10, %s8
  $region1: #{tpu_custom_call.1} parent=0
    #allocation2 [shape = 'u8[40960]{0}', space=vmem, size = 0xa000, scoped, tag = 'input window, operand 0, single buffered']
    #allocation3 [shape = 's32[1]{0}', space=sflag, size = 0x4, scoped, tag = 'scoped memory for tpu_custom_call.1']
    #allocation4 [shape = 's32[1]{0}', space=sflag, size = 0x4, scoped, tag = 'scoped memory for tpu_custom_call.1']
    #allocation5 [shape = 'u8[65536]{0}', space=vmem, size = 0x10000, scoped, tag = 'input window, operand 1, single buffered']
    #allocation6 [shape = 's32[1]{0}', space=sflag, size = 0x4, scoped, tag = 'scoped memory for tpu_custom_call.1']
    #allocation7 [shape = 'u8[65536]{0}', space=vmem, size = 0x10000, scoped, tag = 'input window, operand 3, single buffered']
    #allocation8 [shape = 'u8[40960]{0}', space=vmem, size = 0xa000, scoped, tag = 'output window, operand 0, single buffered']
    #allocation9 [shape = 'u8[40960]{0}', space=vmem, size = 0xa000, scoped, tag = 'output window, operand 1, single buffered']
    #allocation10 [shape = 's32[1]{0}', space=sflag, size = 0x4, scoped, tag = 'scoped memory for tpu_custom_call.1']
    %12 = vsyncpa [#allocation3], 0
    %13 = vsyncpa [#allocation6], 0
    %14 = vsyncpa [#allocation4], 0
    %15 = vsyncpa [#allocation10], 0
    // Predicated region
    $region2: #{tpu_custom_call.1} parent=1 // pred_check
      _
    $region3: #{tpu_custom_call.1} parent=1 // pred_check_branch
      %17 = sbr.rel (0) target = $region5
    $region4: #{tpu_custom_call.1} parent=1 // pred_region
      %s19 = ssub.s32 1280, 1280
      %20 = vsyncadd [#allocation3], %s19
      %s21 = sshll.u32 [#allocation2], 4
      %s22 = int_to_ptr.vmem [resolvable:$true] %s21
      %27 = dma.hbm_to_vmem [thread:$0]  %s0, 1280, %s22, [#allocation3], 128, 128, 8
    $region5: #{tpu_custom_call.1} parent=1 // pred_fallthru
      _
    // Predicated region
    $region6: #{tpu_custom_call.1} parent=1 // pred_check
      _
    $region7: #{tpu_custom_call.1} parent=1 // pred_check_branch
      %29 = sbr.rel (0) target = $region9
    $region8: #{tpu_custom_call.1} parent=1 // pred_region
      %s31 = ssub.s32 2048, 2048
      %32 = vsyncadd [#allocation6], %s31
      %s33 = sshll.u32 [#allocation5], 4
      %s34 = int_to_ptr.vmem [resolvable:$true] %s33
      %39 = dma.hbm_to_vmem [thread:$0]  %s1, 2048, %s34, [#allocation6], 128, 128, 8
    $region9: #{tpu_custom_call.1} parent=1 // pred_fallthru
      _
    // Predicated region
    $region10: #{tpu_custom_call.1} parent=1 // pred_check
      _
    $region11: #{tpu_custom_call.1} parent=1 // pred_check_branch
      %41 = sbr.rel (0) target = $region13
    $region12: #{tpu_custom_call.1} parent=1 // pred_region
      _
    $region13: #{tpu_custom_call.1} parent=1 // pred_fallthru
      _
    // Predicated region
    $region14: #{tpu_custom_call.1} parent=1 // pred_check
      _
    $region15: #{tpu_custom_call.1} parent=1 // pred_check_branch
      %43 = sbr.rel (0) target = $region17
    $region16: #{tpu_custom_call.1} parent=1 // pred_region
      %s45 = ssub.s32 2048, 2048
      %46 = vsyncadd [#allocation6], %s45
      %s47 = sshll.u32 [#allocation7], 4
      %s48 = int_to_ptr.vmem [resolvable:$true] %s47
      %53 = dma.hbm_to_vmem [thread:$0]  %s3, 2048, %s48, [#allocation6], 128, 128, 8
    $region17: #{tpu_custom_call.1} parent=1 // pred_fallthru
      _
    // Predicated region
    $region18: #{tpu_custom_call.1} parent=1 // pred_check
      _
    $region19: #{tpu_custom_call.1} parent=1 // pred_check_branch
      %55 = sbr.rel (0) target = $region21
    $region20: #{tpu_custom_call.1} parent=1 // pred_region
      _
    $region21: #{tpu_custom_call.1} parent=1 // pred_fallthru
      _
    // Predicated region
    $region22: #{tpu_custom_call.1} parent=1 // pred_check
      _
    $region23: #{tpu_custom_call.1} parent=1 // pred_check_branch
      %57 = sbr.rel (0) target = $region25
    $region24: #{tpu_custom_call.1} parent=1 // pred_region
      %58 = dma.done [#allocation3], 1280
    $region25: #{tpu_custom_call.1} parent=1 // pred_fallthru
      _
    // Predicated region
    $region26: #{tpu_custom_call.1} parent=1 // pred_check
      _
    $region27: #{tpu_custom_call.1} parent=1 // pred_check_branch
      %60 = sbr.rel (0) target = $region29
    $region28: #{tpu_custom_call.1} parent=1 // pred_region
      %61 = dma.done [#allocation6], 2048
    $region29: #{tpu_custom_call.1} parent=1 // pred_fallthru
      _
    // Predicated region
    $region30: #{tpu_custom_call.1} parent=1 // pred_check
      _
    $region31: #{tpu_custom_call.1} parent=1 // pred_check_branch
      %63 = sbr.rel (0) target = $region33
    $region32: #{tpu_custom_call.1} parent=1 // pred_region
      %64 = dma.done [#allocation6], 2048
    $region33: #{tpu_custom_call.1} parent=1 // pred_fallthru
      _
    %v65 = vld [vmem:[#allocation2] sm:$0xff]
    %v66 = vld [vmem:[#allocation2 + $0x8] sm:$0xff]
    %v67 = vld [vmem:[#allocation2 + $0x10] sm:$0xff]
    %v68 = vld [vmem:[#allocation2 + $0x18] sm:$0xff]
    %v69 = vld [vmem:[#allocation2 + $0x20] sm:$0xff]
    %v70 = vld [vmem:[#allocation2 + $0x28] sm:$0xff]
    %v71 = vld [vmem:[#allocation2 + $0x30] sm:$0xff]
    %v72 = vld [vmem:[#allocation2 + $0x38] sm:$0xff]
    %v73 = vld [vmem:[#allocation2 + $0x40] sm:$0xff]
    %v74 = vld [vmem:[#allocation2 + $0x48] sm:$0xff]
    %v75 = vld [vmem:[#allocation5] sm:$0xff]
    %v76 = vld [vmem:[#allocation5 + $0x8] sm:$0xff]
    %v77 = vld [vmem:[#allocation5 + $0x10] sm:$0xff]
    %v78 = vld [vmem:[#allocation5 + $0x18] sm:$0xff]
    %v79 = vld [vmem:[#allocation5 + $0x20] sm:$0xff]
    %v80 = vld [vmem:[#allocation5 + $0x28] sm:$0xff]
    %v81 = vld [vmem:[#allocation5 + $0x30] sm:$0xff]
    %v82 = vld [vmem:[#allocation5 + $0x38] sm:$0xff]
    %v83 = vld [vmem:[#allocation5 + $0x40] sm:$0xff]
    %v84 = vld [vmem:[#allocation5 + $0x48] sm:$0xff]
    %v85 = vld [vmem:[#allocation5 + $0x50] sm:$0xff]
    %v86 = vld [vmem:[#allocation5 + $0x58] sm:$0xff]
    %v87 = vld [vmem:[#allocation5 + $0x60] sm:$0xff]
    %v88 = vld [vmem:[#allocation5 + $0x68] sm:$0xff]
    %v89 = vld [vmem:[#allocation5 + $0x70] sm:$0xff]
    %v90 = vld [vmem:[#allocation5 + $0x78] sm:$0xff]
    %v91 = vld [vmem:[%s2] sm:$0x1]
    %v93 = vlaneseq
    %v94 = vshrl.u32 %v93, 7
    %v95 = vsub.s32 0, %v94
    %v96 = vrot.slane %v91, %v95
    %98 = vmatprep.subr.mxu0 0.0
    %99 = vmatpush1.msra.mxu0 %v75
    %100 = vmatprep.subr.mxu0 0.0
    %101 = vmatpush1.msra.mxu0 %v76
    %102 = vmatprep.subr.mxu0 0.0
    %103 = vmatpush1.msra.mxu0 %v77
    %104 = vmatprep.subr.mxu0 0.0
    %105 = vmatpush1.msra.mxu0 %v78
    %106 = vmatprep.subr.mxu0 0.0
    %107 = vmatpush1.msra.mxu0 %v79
    %108 = vmatprep.subr.mxu0 0.0
    %109 = vmatpush1.msra.mxu0 %v80
    %110 = vmatprep.subr.mxu0 0.0
    %111 = vmatpush1.msra.mxu0 %v81
    %112 = vmatprep.subr.mxu0 0.0
    %113 = vmatpush1.msra.mxu0 %v82
    %114 = vmatprep.subr.mxu0 0.0
    %115 = vmatpush1.msra.mxu0 %v83
    %116 = vmatprep.subr.mxu0 0.0
    %117 = vmatpush1.msra.mxu0 %v84
    %118 = vmatprep.subr.mxu0 0.0
    %119 = vmatpush1.msra.mxu0 %v85
    %120 = vmatprep.subr.mxu0 0.0
    %121 = vmatpush1.msra.mxu0 %v86
    %122 = vmatprep.subr.mxu0 0.0
    %123 = vmatpush1.msra.mxu0 %v87
    %124 = vmatprep.subr.mxu0 0.0
    %125 = vmatpush1.msra.mxu0 %v88
    %126 = vmatprep.subr.mxu0 0.0
    %127 = vmatpush1.msra.mxu0 %v89
    %128 = vmatprep.subr.mxu0 0.0
    %129 = vmatpush1.msra.mxu0 %v90
    %130 = vmatprep.subr.mxu0 0.0
    %131 = vmatpush1.msra.mxu0 0.0
    %132 = vmatprep.subr.mxu0 0.0
    %133 = vmatpush1.msra.mxu0 0.0
    %134 = vmatprep.subr.mxu0 0.0
    %135 = vmatpush1.msra.mxu0 0.0
    %136 = vmatprep.subr.mxu0 0.0
    %137 = vmatpush1.msra.mxu0 0.0
    %138 = vmatprep.subr.mxu0 0.0
    %139 = vmatpush1.msra.mxu0 0.0
    %140 = vmatprep.subr.mxu0 0.0
    %141 = vmatpush1.msra.mxu0 0.0
    %142 = vmatprep.subr.mxu0 0.0
    %143 = vmatpush1.msra.mxu0 0.0
    %144 = vmatprep.subr.mxu0 0.0
    %145 = vmatpush1.msra.mxu0 0.0
    %146 = vmatprep.subr.mxu0 0.0
    %147 = vmatpush1.msra.mxu0 0.0
    %148 = vmatprep.subr.mxu0 0.0
    %149 = vmatpush1.msra.mxu0 0.0
    %150 = vmatprep.subr.mxu0 0.0
    %151 = vmatpush1.msra.mxu0 0.0
    %152 = vmatprep.subr.mxu0 0.0
    %153 = vmatpush1.msra.mxu0 0.0
    %154 = vmatprep.subr.mxu0 0.0
    %155 = vmatpush1.msra.mxu0 0.0
    %156 = vmatprep.subr.mxu0 0.0
    %157 = vmatpush1.msra.mxu0 0.0
    %158 = vmatprep.subr.mxu0 0.0
    %159 = vmatpush1.msra.mxu0 0.0
    %160 = vmatprep.subr.mxu0 0.0
    %161 = vmatpush1.msra.mxu0 0.0
    %162 = vmatprep.mubr.f32.mxu0 0.0
    %163 = vmatmul.mubr.f32.gmra.mrb[0].mxu0 %v65
    %v164 = vpop.f32.mrb[0].mxu0
    %v165 = vadd.f32 %v96, %v164
    %v166 = vpop.f32.mrb[0].mxu0
    %167 = vmatprep.mubr.f32.mxu0 0.0
    %168 = vmatmul.mubr.f32.gmra.mrb[0].mxu0 %v66
    %v169 = vpop.f32.mrb[0].mxu0
    %v170 = vadd.f32 %v96, %v169
    %v171 = vpop.f32.mrb[0].mxu0
    %172 = vmatprep.mubr.f32.mxu0 0.0
    %173 = vmatmul.mubr.f32.gmra.mrb[0].mxu0 %v67
    %v174 = vpop.f32.mrb[0].mxu0
    %v175 = vadd.f32 %v96, %v174
    %v176 = vpop.f32.mrb[0].mxu0
    %177 = vmatprep.mubr.f32.mxu0 0.0
    %178 = vmatmul.mubr.f32.gmra.mrb[0].mxu0 %v68
    %v179 = vpop.f32.mrb[0].mxu0
    %v180 = vadd.f32 %v96, %v179
    %v181 = vpop.f32.mrb[0].mxu0
    %182 = vmatprep.mubr.f32.mxu0 0.0
    %183 = vmatmul.mubr.f32.gmra.mrb[0].mxu0 %v69
    %v184 = vpop.f32.mrb[0].mxu0
    %v185 = vadd.f32 %v96, %v184
    %v186 = vpop.f32.mrb[0].mxu0
    %187 = vmatprep.mubr.f32.mxu0 0.0
    %188 = vmatmul.mubr.f32.gmra.mrb[0].mxu0 %v70
    %v189 = vpop.f32.mrb[0].mxu0
    %v190 = vadd.f32 %v96, %v189
    %v191 = vpop.f32.mrb[0].mxu0
    %192 = vmatprep.mubr.f32.mxu0 0.0
    %193 = vmatmul.mubr.f32.gmra.mrb[0].mxu0 %v71
    %v194 = vpop.f32.mrb[0].mxu0
    %v195 = vadd.f32 %v96, %v194
    %v196 = vpop.f32.mrb[0].mxu0
    %197 = vmatprep.mubr.f32.mxu0 0.0
    %198 = vmatmul.mubr.f32.gmra.mrb[0].mxu0 %v72
    %v199 = vpop.f32.mrb[0].mxu0
    %v200 = vadd.f32 %v96, %v199
    %v201 = vpop.f32.mrb[0].mxu0
    %202 = vmatprep.mubr.f32.mxu0 0.0
    %203 = vmatmul.mubr.f32.gmra.mrb[0].mxu0 %v73
    %v204 = vpop.f32.mrb[0].mxu0
    %v205 = vadd.f32 %v96, %v204
    %v206 = vpop.f32.mrb[0].mxu0
    %207 = vmatprep.mubr.f32.mxu0 0.0
    %208 = vmatmul.mubr.f32.gmra.mrb[0].mxu0 %v74
    %v209 = vpop.f32.mrb[0].mxu0
    %v210 = vadd.f32 %v96, %v209
    %v211 = vpop.f32.mrb[0].mxu0
    %212 = vdwg.mxu0
    %v213 = vxor.u32 %v165, 2147483648
    %v214 = vxor.u32 %v170, 2147483648
    %v215 = vxor.u32 %v175, 2147483648
    %v216 = vxor.u32 %v180, 2147483648
    %v217 = vxor.u32 %v185, 2147483648
    %v218 = vxor.u32 %v190, 2147483648
    %v219 = vxor.u32 %v195, 2147483648
    %v220 = vxor.u32 %v200, 2147483648
    %v221 = vxor.u32 %v205, 2147483648
    %v222 = vxor.u32 %v210, 2147483648
    %v223 = vmul.f32 %v213, 1.442695
    %v224 = vpow.pop %v223
    %v225 = vmul.f32 %v214, 1.442695
    %v226 = vpow.pop %v225
    %v227 = vmul.f32 %v215, 1.442695
    %v228 = vpow.pop %v227
    %v229 = vmul.f32 %v216, 1.442695
    %v230 = vpow.pop %v229
    %v231 = vmul.f32 %v217, 1.442695
    %v232 = vpow.pop %v231
    %v233 = vmul.f32 %v218, 1.442695
    %v234 = vpow.pop %v233
    %v235 = vmul.f32 %v219, 1.442695
    %v236 = vpow.pop %v235
    %v237 = vmul.f32 %v220, 1.442695
    %v238 = vpow.pop %v237
    %v239 = vmul.f32 %v221, 1.442695
    %v240 = vpow.pop %v239
    %v241 = vmul.f32 %v222, 1.442695
    %v242 = vpow.pop %v241
    %v243 = vadd.f32 %v224, 1.0
    %v244 = vadd.f32 %v226, 1.0
    %v245 = vadd.f32 %v228, 1.0
    %v246 = vadd.f32 %v230, 1.0
    %v247 = vadd.f32 %v232, 1.0
    %v248 = vadd.f32 %v234, 1.0
    %v249 = vadd.f32 %v236, 1.0
    %v250 = vadd.f32 %v238, 1.0
    %v251 = vadd.f32 %v240, 1.0
    %v252 = vadd.f32 %v242, 1.0
    %v253 = vrcp.pop %v243
    %v254 = vmul.f32 1.0, %v253
    %v255 = vrcp.pop %v244
    %v256 = vmul.f32 1.0, %v255
    %v257 = vrcp.pop %v245
    %v258 = vmul.f32 1.0, %v257
    %v259 = vrcp.pop %v246
    %v260 = vmul.f32 1.0, %v259
    %v261 = vrcp.pop %v247
    %v262 = vmul.f32 1.0, %v261
    %v263 = vrcp.pop %v248
    %v264 = vmul.f32 1.0, %v263
    %v265 = vrcp.pop %v249
    %v266 = vmul.f32 1.0, %v265
    %v267 = vrcp.pop %v250
    %v268 = vmul.f32 1.0, %v267
    %v269 = vrcp.pop %v251
    %v270 = vmul.f32 1.0, %v269
    %v271 = vrcp.pop %v252
    %v272 = vmul.f32 1.0, %v271
    %273 = vst [vmem:[#allocation8] sm:$0xff] %v254
    %274 = vst [vmem:[#allocation8 + $0x8] sm:$0xff] %v256
    %275 = vst [vmem:[#allocation8 + $0x10] sm:$0xff] %v258
    %276 = vst [vmem:[#allocation8 + $0x18] sm:$0xff] %v260
    %277 = vst [vmem:[#allocation8 + $0x20] sm:$0xff] %v262
    %278 = vst [vmem:[#allocation8 + $0x28] sm:$0xff] %v264
    %279 = vst [vmem:[#allocation8 + $0x30] sm:$0xff] %v266
    %280 = vst [vmem:[#allocation8 + $0x38] sm:$0xff] %v268
    %281 = vst [vmem:[#allocation8 + $0x40] sm:$0xff] %v270
    %282 = vst [vmem:[#allocation8 + $0x48] sm:$0xff] %v272
    %v283 = vld [vmem:[#allocation7] sm:$0xff]
    %v284 = vld [vmem:[#allocation7 + $0x8] sm:$0xff]
    %v285 = vld [vmem:[#allocation7 + $0x10] sm:$0xff]
    %v286 = vld [vmem:[#allocation7 + $0x18] sm:$0xff]
    %v287 = vld [vmem:[#allocation7 + $0x20] sm:$0xff]
    %v288 = vld [vmem:[#allocation7 + $0x28] sm:$0xff]
    %v289 = vld [vmem:[#allocation7 + $0x30] sm:$0xff]
    %v290 = vld [vmem:[#allocation7 + $0x38] sm:$0xff]
    %v291 = vld [vmem:[#allocation7 + $0x40] sm:$0xff]
    %v292 = vld [vmem:[#allocation7 + $0x48] sm:$0xff]
    %v293 = vld [vmem:[#allocation7 + $0x50] sm:$0xff]
    %v294 = vld [vmem:[#allocation7 + $0x58] sm:$0xff]
    %v295 = vld [vmem:[#allocation7 + $0x60] sm:$0xff]
    %v296 = vld [vmem:[#allocation7 + $0x68] sm:$0xff]
    %v297 = vld [vmem:[#allocation7 + $0x70] sm:$0xff]
    %v298 = vld [vmem:[#allocation7 + $0x78] sm:$0xff]
    %v299 = vld [vmem:[%s4] sm:$0x1]
    %v301 = vlaneseq
    %v302 = vshrl.u32 %v301, 7
    %v303 = vsub.s32 0, %v302
    %v304 = vrot.slane %v299, %v303
    %306 = vmatprep.subr.mxu0 0.0
    %307 = vmatpush1.msra.mxu0 %v283
    %308 = vmatprep.subr.mxu0 0.0
    %309 = vmatpush1.msra.mxu0 %v284
    %310 = vmatprep.subr.mxu0 0.0
    %311 = vmatpush1.msra.mxu0 %v285
    %312 = vmatprep.subr.mxu0 0.0
    %313 = vmatpush1.msra.mxu0 %v286
    %314 = vmatprep.subr.mxu0 0.0
    %315 = vmatpush1.msra.mxu0 %v287
    %316 = vmatprep.subr.mxu0 0.0
    %317 = vmatpush1.msra.mxu0 %v288
    %318 = vmatprep.subr.mxu0 0.0
    %319 = vmatpush1.msra.mxu0 %v289
    %320 = vmatprep.subr.mxu0 0.0
    %321 = vmatpush1.msra.mxu0 %v290
    %322 = vmatprep.subr.mxu0 0.0
    %323 = vmatpush1.msra.mxu0 %v291
    %324 = vmatprep.subr.mxu0 0.0
    %325 = vmatpush1.msra.mxu0 %v292
    %326 = vmatprep.subr.mxu0 0.0
    %327 = vmatpush1.msra.mxu0 %v293
    %328 = vmatprep.subr.mxu0 0.0
    %329 = vmatpush1.msra.mxu0 %v294
    %330 = vmatprep.subr.mxu0 0.0
    %331 = vmatpush1.msra.mxu0 %v295
    %332 = vmatprep.subr.mxu0 0.0
    %333 = vmatpush1.msra.mxu0 %v296
    %334 = vmatprep.subr.mxu0 0.0
    %335 = vmatpush1.msra.mxu0 %v297
    %336 = vmatprep.subr.mxu0 0.0
    %337 = vmatpush1.msra.mxu0 %v298
    %338 = vmatprep.subr.mxu0 0.0
    %339 = vmatpush1.msra.mxu0 0.0
    %340 = vmatprep.subr.mxu0 0.0
    %341 = vmatpush1.msra.mxu0 0.0
    %342 = vmatprep.subr.mxu0 0.0
    %343 = vmatpush1.msra.mxu0 0.0
    %344 = vmatprep.subr.mxu0 0.0
    %345 = vmatpush1.msra.mxu0 0.0
    %346 = vmatprep.subr.mxu0 0.0
    %347 = vmatpush1.msra.mxu0 0.0
    %348 = vmatprep.subr.mxu0 0.0
    %349 = vmatpush1.msra.mxu0 0.0
    %350 = vmatprep.subr.mxu0 0.0
    %351 = vmatpush1.msra.mxu0 0.0
    %352 = vmatprep.subr.mxu0 0.0
    %353 = vmatpush1.msra.mxu0 0.0
    %354 = vmatprep.subr.mxu0 0.0
    %355 = vmatpush1.msra.mxu0 0.0
    %356 = vmatprep.subr.mxu0 0.0
    %357 = vmatpush1.msra.mxu0 0.0
    %358 = vmatprep.subr.mxu0 0.0
    %359 = vmatpush1.msra.mxu0 0.0
    %360 = vmatprep.subr.mxu0 0.0
    %361 = vmatpush1.msra.mxu0 0.0
    %362 = vmatprep.subr.mxu0 0.0
    %363 = vmatpush1.msra.mxu0 0.0
    %364 = vmatprep.subr.mxu0 0.0
    %365 = vmatpush1.msra.mxu0 0.0
    %366 = vmatprep.subr.mxu0 0.0
    %367 = vmatpush1.msra.mxu0 0.0
    %368 = vmatprep.subr.mxu0 0.0
    %369 = vmatpush1.msra.mxu0 0.0
    %370 = vmatprep.mubr.f32.mxu0 0.0
    %371 = vmatmul.mubr.f32.gmra.mrb[0].mxu0 %v254
    %v372 = vpop.f32.mrb[0].mxu0
    %v373 = vadd.f32 %v304, %v372
    %v374 = vpop.f32.mrb[0].mxu0
    %375 = vmatprep.mubr.f32.mxu0 0.0
    %376 = vmatmul.mubr.f32.gmra.mrb[0].mxu0 %v256
    %v377 = vpop.f32.mrb[0].mxu0
    %v378 = vadd.f32 %v304, %v377
    %v379 = vpop.f32.mrb[0].mxu0
    %380 = vmatprep.mubr.f32.mxu0 0.0
    %381 = vmatmul.mubr.f32.gmra.mrb[0].mxu0 %v258
    %v382 = vpop.f32.mrb[0].mxu0
    %v383 = vadd.f32 %v304, %v382
    %v384 = vpop.f32.mrb[0].mxu0
    %385 = vmatprep.mubr.f32.mxu0 0.0
    %386 = vmatmul.mubr.f32.gmra.mrb[0].mxu0 %v260
    %v387 = vpop.f32.mrb[0].mxu0
    %v388 = vadd.f32 %v304, %v387
    %v389 = vpop.f32.mrb[0].mxu0
    %390 = vmatprep.mubr.f32.mxu0 0.0
    %391 = vmatmul.mubr.f32.gmra.mrb[0].mxu0 %v262
    %v392 = vpop.f32.mrb[0].mxu0
    %v393 = vadd.f32 %v304, %v392
    %v394 = vpop.f32.mrb[0].mxu0
    %395 = vmatprep.mubr.f32.mxu0 0.0
    %396 = vmatmul.mubr.f32.gmra.mrb[0].mxu0 %v264
    %v397 = vpop.f32.mrb[0].mxu0
    %v398 = vadd.f32 %v304, %v397
    %v399 = vpop.f32.mrb[0].mxu0
    %400 = vmatprep.mubr.f32.mxu0 0.0
    %401 = vmatmul.mubr.f32.gmra.mrb[0].mxu0 %v266
    %v402 = vpop.f32.mrb[0].mxu0
    %v403 = vadd.f32 %v304, %v402
    %v404 = vpop.f32.mrb[0].mxu0
    %405 = vmatprep.mubr.f32.mxu0 0.0
    %406 = vmatmul.mubr.f32.gmra.mrb[0].mxu0 %v268
    %v407 = vpop.f32.mrb[0].mxu0
    %v408 = vadd.f32 %v304, %v407
    %v409 = vpop.f32.mrb[0].mxu0
    %410 = vmatprep.mubr.f32.mxu0 0.0
    %411 = vmatmul.mubr.f32.gmra.mrb[0].mxu0 %v270
    %v412 = vpop.f32.mrb[0].mxu0
    %v413 = vadd.f32 %v304, %v412
    %v414 = vpop.f32.mrb[0].mxu0
    %415 = vmatprep.mubr.f32.mxu0 0.0
    %416 = vmatmul.mubr.f32.gmra.mrb[0].mxu0 %v272
    %v417 = vpop.f32.mrb[0].mxu0
    %v418 = vadd.f32 %v304, %v417
    %v419 = vpop.f32.mrb[0].mxu0
    %420 = vdwg.mxu0
    %v421 = vxor.u32 %v373, 2147483648
    %v422 = vxor.u32 %v378, 2147483648
    %v423 = vxor.u32 %v383, 2147483648
    %v424 = vxor.u32 %v388, 2147483648
    %v425 = vxor.u32 %v393, 2147483648
    %v426 = vxor.u32 %v398, 2147483648
    %v427 = vxor.u32 %v403, 2147483648
    %v428 = vxor.u32 %v408, 2147483648
    %v429 = vxor.u32 %v413, 2147483648
    %v430 = vxor.u32 %v418, 2147483648
    %v431 = vmul.f32 %v421, 1.442695
    %v432 = vpow.pop %v431
    %v433 = vmul.f32 %v422, 1.442695
    %v434 = vpow.pop %v433
    %v435 = vmul.f32 %v423, 1.442695
    %v436 = vpow.pop %v435
    %v437 = vmul.f32 %v424, 1.442695
    %v438 = vpow.pop %v437
    %v439 = vmul.f32 %v425, 1.442695
    %v440 = vpow.pop %v439
    %v441 = vmul.f32 %v426, 1.442695
    %v442 = vpow.pop %v441
    %v443 = vmul.f32 %v427, 1.442695
    %v444 = vpow.pop %v443
    %v445 = vmul.f32 %v428, 1.442695
    %v446 = vpow.pop %v445
    %v447 = vmul.f32 %v429, 1.442695
    %v448 = vpow.pop %v447
    %v449 = vmul.f32 %v430, 1.442695
    %v450 = vpow.pop %v449
    %v451 = vadd.f32 %v432, 1.0
    %v452 = vadd.f32 %v434, 1.0
    %v453 = vadd.f32 %v436, 1.0
    %v454 = vadd.f32 %v438, 1.0
    %v455 = vadd.f32 %v440, 1.0
    %v456 = vadd.f32 %v442, 1.0
    %v457 = vadd.f32 %v444, 1.0
    %v458 = vadd.f32 %v446, 1.0
    %v459 = vadd.f32 %v448, 1.0
    %v460 = vadd.f32 %v450, 1.0
    %v461 = vrcp.pop %v451
    %v462 = vmul.f32 1.0, %v461
    %v463 = vrcp.pop %v452
    %v464 = vmul.f32 1.0, %v463
    %v465 = vrcp.pop %v453
    %v466 = vmul.f32 1.0, %v465
    %v467 = vrcp.pop %v454
    %v468 = vmul.f32 1.0, %v467
    %v469 = vrcp.pop %v455
    %v470 = vmul.f32 1.0, %v469
    %v471 = vrcp.pop %v456
    %v472 = vmul.f32 1.0, %v471
    %v473 = vrcp.pop %v457
    %v474 = vmul.f32 1.0, %v473
    %v475 = vrcp.pop %v458
    %v476 = vmul.f32 1.0, %v475
    %v477 = vrcp.pop %v459
    %v478 = vmul.f32 1.0, %v477
    %v479 = vrcp.pop %v460
    %v480 = vmul.f32 1.0, %v479
    %481 = vst [vmem:[#allocation9] sm:$0xff] %v462
    %482 = vst [vmem:[#allocation9 + $0x8] sm:$0xff] %v464
    %483 = vst [vmem:[#allocation9 + $0x10] sm:$0xff] %v466
    %484 = vst [vmem:[#allocation9 + $0x18] sm:$0xff] %v468
    %485 = vst [vmem:[#allocation9 + $0x20] sm:$0xff] %v470
    %486 = vst [vmem:[#allocation9 + $0x28] sm:$0xff] %v472
    %487 = vst [vmem:[#allocation9 + $0x30] sm:$0xff] %v474
    %488 = vst [vmem:[#allocation9 + $0x38] sm:$0xff] %v476
    %489 = vst [vmem:[#allocation9 + $0x40] sm:$0xff] %v478
    %490 = vst [vmem:[#allocation9 + $0x48] sm:$0xff] %v480
    // Predicated region
    $region34: #{tpu_custom_call.1} parent=1 // pred_check
      _
    $region35: #{tpu_custom_call.1} parent=1 // pred_check_branch
      %492 = sbr.rel (0) target = $region37
    $region36: #{tpu_custom_call.1} parent=1 // pred_region
      %s494 = ssub.s32 1280, 1280
      %495 = vsyncadd [#allocation4], %s494
      %s496 = sshll.u32 [#allocation8], 4
      %s497 = int_to_ptr.vmem [resolvable:$true] %s496
      %502 = dma.vmem_to_hbm [thread:$0]  %s497, 1280, %s5, [#allocation4], 128, 128, 8
    $region37: #{tpu_custom_call.1} parent=1 // pred_fallthru
      _
    // Predicated region
    $region38: #{tpu_custom_call.1} parent=1 // pred_check
      _
    $region39: #{tpu_custom_call.1} parent=1 // pred_check_branch
      %504 = sbr.rel (0) target = $region41
    $region40: #{tpu_custom_call.1} parent=1 // pred_region
      %s506 = ssub.s32 1280, 1280
      %507 = vsyncadd [#allocation10], %s506
      %s508 = sshll.u32 [#allocation9], 4
      %s509 = int_to_ptr.vmem [resolvable:$true] %s508
      %514 = dma.vmem_to_hbm [thread:$0]  %s509, 1280, %s6, [#allocation10], 128, 128, 8
    $region41: #{tpu_custom_call.1} parent=1 // pred_fallthru
      _
    // Predicated region
    $region42: #{tpu_custom_call.1} parent=1 // pred_check
      _
    $region43: #{tpu_custom_call.1} parent=1 // pred_check_branch
      %516 = sbr.rel (0) target = $region45
    $region44: #{tpu_custom_call.1} parent=1 // pred_region
      %517 = dma.done [#allocation4], 1280
    $region45: #{tpu_custom_call.1} parent=1 // pred_fallthru
      _
    // Predicated region
    $region46: #{tpu_custom_call.1} parent=1 // pred_check
      _
    $region47: #{tpu_custom_call.1} parent=1 // pred_check_branch
      %519 = sbr.rel (0) target = $region49
    $region48: #{tpu_custom_call.1} parent=1 // pred_region
      %520 = dma.done [#allocation10], 1280
    $region49: #{tpu_custom_call.1} parent=1 // pred_fallthru
      _
    %521 = vsyncpa [#allocation3], 1
    %522 = vsyncpa [#allocation6], 1
    %523 = vsyncpa [#allocation4], 1
    %524 = vsyncpa [#allocation10], 1

// kernel: tpu_custom_call.1
$region0: #{tpu_custom_call.1}
  #allocation0 [shape = 'u32[]', space=smem, size = 0x4, offset = 0x4, fixed_abs, tag = 'smem constant byte address 0x4 - core index']
  #allocation1 [shape = 'u32[144,128]{1,0:T(1,128)}', space=vmem, size = 0x12000, scoped, tag = 'internal scratch']
  %s0 = inlined_call_operand.hbm [shape: f32[80,128], index: 0, kind: input, shape index: {}]
  %s1 = inlined_call_operand.hbm [shape: f32[128,128], index: 1, kind: input, shape index: {}]
  %s2 = inlined_call_operand.vmem [shape: f32[1,128], index: 2, kind: input, shape index: {}]
  %s3 = inlined_call_operand.hbm [shape: f32[128,128], index: 3, kind: input, shape index: {}]
  %s4 = inlined_call_operand.vmem [shape: f32[1,128], index: 4, kind: input, shape index: {}]
  %s5 = inlined_call_operand.hbm [shape: f32[80,128], index: 5, kind: output, shape index: {0}]
  %s6 = inlined_call_operand.hbm [shape: f32[80,128], index: 6, kind: output, shape index: {1}]
  %7 = xla_tuple %s5, %s6
  %s8 = sld [smem:[#allocation0]]
  $region50: #{tpu_custom_call.1} parent=0
    _
  %s10 = ssub.s32 1, %s8
  %s11 = scalar_select 0, %s10, %s8
  $region1: #{tpu_custom_call.1} parent=0
    #allocation2 [shape = 'u8[40960]{0}', space=vmem, size = 0xa000, scoped, tag = 'input window, operand 0, single buffered']
    #allocation3 [shape = 's32[1]{0}', space=sflag, size = 0x4, scoped, tag = 'scoped memory for tpu_custom_call.1']
    #allocation4 [shape = 's32[1]{0}', space=sflag, size = 0x4, scoped, tag = 'scoped memory for tpu_custom_call.1']
    #allocation5 [shape = 'u8[65536]{0}', space=vmem, size = 0x10000, scoped, tag = 'input window, operand 1, single buffered']
    #allocation6 [shape = 's32[1]{0}', space=sflag, size = 0x4, scoped, tag = 'scoped memory for tpu_custom_call.1']
    #allocation7 [shape = 'u8[65536]{0}', space=vmem, size = 0x10000, scoped, tag = 'input window, operand 3, single buffered']
    #allocation8 [shape = 'u8[40960]{0}', space=vmem, size = 0xa000, scoped, tag = 'output window, operand 0, single buffered']
    #allocation9 [shape = 'u8[40960]{0}', space=vmem, size = 0xa000, scoped, tag = 'output window, operand 1, single buffered']
    #allocation10 [shape = 's32[1]{0}', space=sflag, size = 0x4, scoped, tag = 'scoped memory for tpu_custom_call.1']
    %12 = vsyncpa [#allocation3], 0
    %13 = vsyncpa [#allocation6], 0
    %14 = vsyncpa [#allocation4], 0
    %15 = vsyncpa [#allocation10], 0
    // Predicated region
    $region2: #{tpu_custom_call.1} parent=1 // pred_check
      _
    $region3: #{tpu_custom_call.1} parent=1 // pred_check_branch
      %17 = sbr.rel (0) target = $region5
    $region4: #{tpu_custom_call.1} parent=1 // pred_region
      %s19 = ssub.s32 1280, 1280
      %20 = vsyncadd [#allocation3], %s19
      %s21 = sshll.u32 [#allocation2], 4
      %s22 = int_to_ptr.vmem [resolvable:$true] %s21
      %27 = dma.hbm_to_vmem [thread:$0]  %s0, 1280, %s22, [#allocation3], 128, 128, 8
    $region5: #{tpu_custom_call.1} parent=1 // pred_fallthru
      _
    // Predicated region
    $region6: #{tpu_custom_call.1} parent=1 // pred_check
      _
    $region7: #{tpu_custom_call.1} parent=1 // pred_check_branch
      %29 = sbr.rel (0) target = $region9
    $region8: #{tpu_custom_call.1} parent=1 // pred_region
      %s31 = ssub.s32 2048, 2048
      %32 = vsyncadd [#allocation6], %s31
      %s33 = sshll.u32 [#allocation5], 4
      %s34 = int_to_ptr.vmem [resolvable:$true] %s33
      %39 = dma.hbm_to_vmem [thread:$0]  %s1, 2048, %s34, [#allocation6], 128, 128, 8
    $region9: #{tpu_custom_call.1} parent=1 // pred_fallthru
      _
    // Predicated region
    $region10: #{tpu_custom_call.1} parent=1 // pred_check
      _
    $region11: #{tpu_custom_call.1} parent=1 // pred_check_branch
      %41 = sbr.rel (0) target = $region13
    $region12: #{tpu_custom_call.1} parent=1 // pred_region
      _
    $region13: #{tpu_custom_call.1} parent=1 // pred_fallthru
      _
    // Predicated region
    $region14: #{tpu_custom_call.1} parent=1 // pred_check
      _
    $region15: #{tpu_custom_call.1} parent=1 // pred_check_branch
      %43 = sbr.rel (0) target = $region17
    $region16: #{tpu_custom_call.1} parent=1 // pred_region
      %s45 = ssub.s32 2048, 2048
      %46 = vsyncadd [#allocation6], %s45
      %s47 = sshll.u32 [#allocation7], 4
      %s48 = int_to_ptr.vmem [resolvable:$true] %s47
      %53 = dma.hbm_to_vmem [thread:$0]  %s3, 2048, %s48, [#allocation6], 128, 128, 8
    $region17: #{tpu_custom_call.1} parent=1 // pred_fallthru
      _
    // Predicated region
    $region18: #{tpu_custom_call.1} parent=1 // pred_check
      _
    $region19: #{tpu_custom_call.1} parent=1 // pred_check_branch
      %55 = sbr.rel (0) target = $region21
    $region20: #{tpu_custom_call.1} parent=1 // pred_region
      _
    $region21: #{tpu_custom_call.1} parent=1 // pred_fallthru
      _
    // Predicated region
    $region22: #{tpu_custom_call.1} parent=1 // pred_check
      _
    $region23: #{tpu_custom_call.1} parent=1 // pred_check_branch
      %57 = sbr.rel (0) target = $region25
    $region24: #{tpu_custom_call.1} parent=1 // pred_region
      %58 = dma.done [#allocation3], 1280
    $region25: #{tpu_custom_call.1} parent=1 // pred_fallthru
      _
    // Predicated region
    $region26: #{tpu_custom_call.1} parent=1 // pred_check
      _
    $region27: #{tpu_custom_call.1} parent=1 // pred_check_branch
      %60 = sbr.rel (0) target = $region29
    $region28: #{tpu_custom_call.1} parent=1 // pred_region
      %61 = dma.done [#allocation6], 2048
    $region29: #{tpu_custom_call.1} parent=1 // pred_fallthru
      _
    // Predicated region
    $region30: #{tpu_custom_call.1} parent=1 // pred_check
      _
    $region31: #{tpu_custom_call.1} parent=1 // pred_check_branch
      %63 = sbr.rel (0) target = $region33
    $region32: #{tpu_custom_call.1} parent=1 // pred_region
      %64 = dma.done [#allocation6], 2048
    $region33: #{tpu_custom_call.1} parent=1 // pred_fallthru
      _
    %v65 = vld [vmem:[#allocation2] sm:$0xff]
    %v66 = vld [vmem:[#allocation2 + $0x8] sm:$0xff]
    %v67 = vld [vmem:[#allocation2 + $0x10] sm:$0xff]
    %v68 = vld [vmem:[#allocation2 + $0x18] sm:$0xff]
    %v69 = vld [vmem:[#allocation2 + $0x20] sm:$0xff]
    %v70 = vld [vmem:[#allocation2 + $0x28] sm:$0xff]
    %v71 = vld [vmem:[#allocation2 + $0x30] sm:$0xff]
    %v72 = vld [vmem:[#allocation2 + $0x38] sm:$0xff]
    %v73 = vld [vmem:[#allocation2 + $0x40] sm:$0xff]
    %v74 = vld [vmem:[#allocation2 + $0x48] sm:$0xff]
    %v75 = vld [vmem:[#allocation5] sm:$0xff]
    %v76 = vld [vmem:[#allocation5 + $0x8] sm:$0xff]
    %v77 = vld [vmem:[#allocation5 + $0x10] sm:$0xff]
    %v78 = vld [vmem:[#allocation5 + $0x18] sm:$0xff]
    %v79 = vld [vmem:[#allocation5 + $0x20] sm:$0xff]
    %v80 = vld [vmem:[#allocation5 + $0x28] sm:$0xff]
    %v81 = vld [vmem:[#allocation5 + $0x30] sm:$0xff]
    %v82 = vld [vmem:[#allocation5 + $0x38] sm:$0xff]
    %v83 = vld [vmem:[#allocation5 + $0x40] sm:$0xff]
    %v84 = vld [vmem:[#allocation5 + $0x48] sm:$0xff]
    %v85 = vld [vmem:[#allocation5 + $0x50] sm:$0xff]
    %v86 = vld [vmem:[#allocation5 + $0x58] sm:$0xff]
    %v87 = vld [vmem:[#allocation5 + $0x60] sm:$0xff]
    %v88 = vld [vmem:[#allocation5 + $0x68] sm:$0xff]
    %v89 = vld [vmem:[#allocation5 + $0x70] sm:$0xff]
    %v90 = vld [vmem:[#allocation5 + $0x78] sm:$0xff]
    %v91 = vld [vmem:[%s2] sm:$0x1]
    %v93 = vlaneseq
    %v94 = vshrl.u32 %v93, 7
    %v95 = vsub.s32 0, %v94
    %v96 = vrot.slane %v91, %v95
    %98 = vmatprep.subr.mxu0 0.0
    %99 = vmatpush1.msra.mxu0 %v75
    %100 = vmatprep.subr.mxu0 0.0
    %101 = vmatpush1.msra.mxu0 %v76
    %102 = vmatprep.subr.mxu0 0.0
    %103 = vmatpush1.msra.mxu0 %v77
    %104 = vmatprep.subr.mxu0 0.0
    %105 = vmatpush1.msra.mxu0 %v78
    %106 = vmatprep.subr.mxu0 0.0
    %107 = vmatpush1.msra.mxu0 %v79
    %108 = vmatprep.subr.mxu0 0.0
    %109 = vmatpush1.msra.mxu0 %v80
    %110 = vmatprep.subr.mxu0 0.0
    %111 = vmatpush1.msra.mxu0 %v81
    %112 = vmatprep.subr.mxu0 0.0
    %113 = vmatpush1.msra.mxu0 %v82
    %114 = vmatprep.subr.mxu0 0.0
    %115 = vmatpush1.msra.mxu0 %v83
    %116 = vmatprep.subr.mxu0 0.0
    %117 = vmatpush1.msra.mxu0 %v84
    %118 = vmatprep.subr.mxu0 0.0
    %119 = vmatpush1.msra.mxu0 %v85
    %120 = vmatprep.subr.mxu0 0.0
    %121 = vmatpush1.msra.mxu0 %v86
    %122 = vmatprep.subr.mxu0 0.0
    %123 = vmatpush1.msra.mxu0 %v87
    %124 = vmatprep.subr.mxu0 0.0
    %125 = vmatpush1.msra.mxu0 %v88
    %126 = vmatprep.subr.mxu0 0.0
    %127 = vmatpush1.msra.mxu0 %v89
    %128 = vmatprep.subr.mxu0 0.0
    %129 = vmatpush1.msra.mxu0 %v90
    %130 = vmatprep.subr.mxu0 0.0
    %131 = vmatpush1.msra.mxu0 0.0
    %132 = vmatprep.subr.mxu0 0.0
    %133 = vmatpush1.msra.mxu0 0.0
    %134 = vmatprep.subr.mxu0 0.0
    %135 = vmatpush1.msra.mxu0 0.0
    %136 = vmatprep.subr.mxu0 0.0
    %137 = vmatpush1.msra.mxu0 0.0
    %138 = vmatprep.subr.mxu0 0.0
    %139 = vmatpush1.msra.mxu0 0.0
    %140 = vmatprep.subr.mxu0 0.0
    %141 = vmatpush1.msra.mxu0 0.0
    %142 = vmatprep.subr.mxu0 0.0
    %143 = vmatpush1.msra.mxu0 0.0
    %144 = vmatprep.subr.mxu0 0.0
    %145 = vmatpush1.msra.mxu0 0.0
    %146 = vmatprep.subr.mxu0 0.0
    %147 = vmatpush1.msra.mxu0 0.0
    %148 = vmatprep.subr.mxu0 0.0
    %149 = vmatpush1.msra.mxu0 0.0
    %150 = vmatprep.subr.mxu0 0.0
    %151 = vmatpush1.msra.mxu0 0.0
    %152 = vmatprep.subr.mxu0 0.0
    %153 = vmatpush1.msra.mxu0 0.0
    %154 = vmatprep.subr.mxu0 0.0
    %155 = vmatpush1.msra.mxu0 0.0
    %156 = vmatprep.subr.mxu0 0.0
    %157 = vmatpush1.msra.mxu0 0.0
    %158 = vmatprep.subr.mxu0 0.0
    %159 = vmatpush1.msra.mxu0 0.0
    %160 = vmatprep.subr.mxu0 0.0
    %161 = vmatpush1.msra.mxu0 0.0
    %162 = vmatprep.mubr.f32.mxu0 0.0
    %163 = vmatmul.mubr.f32.gmra.mrb[0].mxu0 %v65
    %v164 = vpop.f32.mrb[0].mxu0
    %v165 = vadd.f32 %v96, %v164
    %v166 = vpop.f32.mrb[0].mxu0
    %167 = vmatprep.mubr.f32.mxu0 0.0
    %168 = vmatmul.mubr.f32.gmra.mrb[0].mxu0 %v66
    %v169 = vpop.f32.mrb[0].mxu0
    %v170 = vadd.f32 %v96, %v169
    %v171 = vpop.f32.mrb[0].mxu0
    %172 = vmatprep.mubr.f32.mxu0 0.0
    %173 = vmatmul.mubr.f32.gmra.mrb[0].mxu0 %v67
    %v174 = vpop.f32.mrb[0].mxu0
    %v175 = vadd.f32 %v96, %v174
    %v176 = vpop.f32.mrb[0].mxu0
    %177 = vmatprep.mubr.f32.mxu0 0.0
    %178 = vmatmul.mubr.f32.gmra.mrb[0].mxu0 %v68
    %v179 = vpop.f32.mrb[0].mxu0
    %v180 = vadd.f32 %v96, %v179
    %v181 = vpop.f32.mrb[0].mxu0
    %182 = vmatprep.mubr.f32.mxu0 0.0
    %183 = vmatmul.mubr.f32.gmra.mrb[0].mxu0 %v69
    %v184 = vpop.f32.mrb[0].mxu0
    %v185 = vadd.f32 %v96, %v184
    %v186 = vpop.f32.mrb[0].mxu0
    %187 = vmatprep.mubr.f32.mxu0 0.0
    %188 = vmatmul.mubr.f32.gmra.mrb[0].mxu0 %v70
    %v189 = vpop.f32.mrb[0].mxu0
    %v190 = vadd.f32 %v96, %v189
    %v191 = vpop.f32.mrb[0].mxu0
    %192 = vmatprep.mubr.f32.mxu0 0.0
    %193 = vmatmul.mubr.f32.gmra.mrb[0].mxu0 %v71
    %v194 = vpop.f32.mrb[0].mxu0
    %v195 = vadd.f32 %v96, %v194
    %v196 = vpop.f32.mrb[0].mxu0
    %197 = vmatprep.mubr.f32.mxu0 0.0
    %198 = vmatmul.mubr.f32.gmra.mrb[0].mxu0 %v72
    %v199 = vpop.f32.mrb[0].mxu0
    %v200 = vadd.f32 %v96, %v199
    %v201 = vpop.f32.mrb[0].mxu0
    %202 = vmatprep.mubr.f32.mxu0 0.0
    %203 = vmatmul.mubr.f32.gmra.mrb[0].mxu0 %v73
    %v204 = vpop.f32.mrb[0].mxu0
    %v205 = vadd.f32 %v96, %v204
    %v206 = vpop.f32.mrb[0].mxu0
    %207 = vmatprep.mubr.f32.mxu0 0.0
    %208 = vmatmul.mubr.f32.gmra.mrb[0].mxu0 %v74
    %v209 = vpop.f32.mrb[0].mxu0
    %v210 = vadd.f32 %v96, %v209
    %v211 = vpop.f32.mrb[0].mxu0
    %212 = vdwg.mxu0
    %v213 = vxor.u32 %v165, 2147483648
    %v214 = vxor.u32 %v170, 2147483648
    %v215 = vxor.u32 %v175, 2147483648
    %v216 = vxor.u32 %v180, 2147483648
    %v217 = vxor.u32 %v185, 2147483648
    %v218 = vxor.u32 %v190, 2147483648
    %v219 = vxor.u32 %v195, 2147483648
    %v220 = vxor.u32 %v200, 2147483648
    %v221 = vxor.u32 %v205, 2147483648
    %v222 = vxor.u32 %v210, 2147483648
    %v223 = vmul.f32 %v213, 1.442695
    %v224 = vpow.pop %v223
    %v225 = vmul.f32 %v214, 1.442695
    %v226 = vpow.pop %v225
    %v227 = vmul.f32 %v215, 1.442695
    %v228 = vpow.pop %v227
    %v229 = vmul.f32 %v216, 1.442695
    %v230 = vpow.pop %v229
    %v231 = vmul.f32 %v217, 1.442695
    %v232 = vpow.pop %v231
    %v233 = vmul.f32 %v218, 1.442695
    %v234 = vpow.pop %v233
    %v235 = vmul.f32 %v219, 1.442695
    %v236 = vpow.pop %v235
    %v237 = vmul.f32 %v220, 1.442695
    %v238 = vpow.pop %v237
    %v239 = vmul.f32 %v221, 1.442695
    %v240 = vpow.pop %v239
    %v241 = vmul.f32 %v222, 1.442695
    %v242 = vpow.pop %v241
    %v243 = vadd.f32 %v224, 1.0
    %v244 = vadd.f32 %v226, 1.0
    %v245 = vadd.f32 %v228, 1.0
    %v246 = vadd.f32 %v230, 1.0
    %v247 = vadd.f32 %v232, 1.0
    %v248 = vadd.f32 %v234, 1.0
    %v249 = vadd.f32 %v236, 1.0
    %v250 = vadd.f32 %v238, 1.0
    %v251 = vadd.f32 %v240, 1.0
    %v252 = vadd.f32 %v242, 1.0
    %v253 = vrcp.pop %v243
    %v254 = vmul.f32 1.0, %v253
    %v255 = vrcp.pop %v244
    %v256 = vmul.f32 1.0, %v255
    %v257 = vrcp.pop %v245
    %v258 = vmul.f32 1.0, %v257
    %v259 = vrcp.pop %v246
    %v260 = vmul.f32 1.0, %v259
    %v261 = vrcp.pop %v247
    %v262 = vmul.f32 1.0, %v261
    %v263 = vrcp.pop %v248
    %v264 = vmul.f32 1.0, %v263
    %v265 = vrcp.pop %v249
    %v266 = vmul.f32 1.0, %v265
    %v267 = vrcp.pop %v250
    %v268 = vmul.f32 1.0, %v267
    %v269 = vrcp.pop %v251
    %v270 = vmul.f32 1.0, %v269
    %v271 = vrcp.pop %v252
    %v272 = vmul.f32 1.0, %v271
    %273 = vst [vmem:[#allocation8] sm:$0xff] %v254
    %274 = vst [vmem:[#allocation8 + $0x8] sm:$0xff] %v256
    %275 = vst [vmem:[#allocation8 + $0x10] sm:$0xff] %v258
    %276 = vst [vmem:[#allocation8 + $0x18] sm:$0xff] %v260
    %277 = vst [vmem:[#allocation8 + $0x20] sm:$0xff] %v262
    %278 = vst [vmem:[#allocation8 + $0x28] sm:$0xff] %v264
    %279 = vst [vmem:[#allocation8 + $0x30] sm:$0xff] %v266
    %280 = vst [vmem:[#allocation8 + $0x38] sm:$0xff] %v268
    %281 = vst [vmem:[#allocation8 + $0x40] sm:$0xff] %v270
    %282 = vst [vmem:[#allocation8 + $0x48] sm:$0xff] %v272
    %v283 = vld [vmem:[#allocation7] sm:$0xff]
    %v284 = vld [vmem:[#allocation7 + $0x8] sm:$0xff]
    %v285 = vld [vmem:[#allocation7 + $0x10] sm:$0xff]
    %v286 = vld [vmem:[#allocation7 + $0x18] sm:$0xff]
    %v287 = vld [vmem:[#allocation7 + $0x20] sm:$0xff]
    %v288 = vld [vmem:[#allocation7 + $0x28] sm:$0xff]
    %v289 = vld [vmem:[#allocation7 + $0x30] sm:$0xff]
    %v290 = vld [vmem:[#allocation7 + $0x38] sm:$0xff]
    %v291 = vld [vmem:[#allocation7 + $0x40] sm:$0xff]
    %v292 = vld [vmem:[#allocation7 + $0x48] sm:$0xff]
    %v293 = vld [vmem:[#allocation7 + $0x50] sm:$0xff]
    %v294 = vld [vmem:[#allocation7 + $0x58] sm:$0xff]
    %v295 = vld [vmem:[#allocation7 + $0x60] sm:$0xff]
    %v296 = vld [vmem:[#allocation7 + $0x68] sm:$0xff]
    %v297 = vld [vmem:[#allocation7 + $0x70] sm:$0xff]
    %v298 = vld [vmem:[#allocation7 + $0x78] sm:$0xff]
    %v299 = vld [vmem:[%s4] sm:$0x1]
    %v301 = vlaneseq
    %v302 = vshrl.u32 %v301, 7
    %v303 = vsub.s32 0, %v302
    %v304 = vrot.slane %v299, %v303
    %306 = vmatprep.subr.mxu0 0.0
    %307 = vmatpush1.msra.mxu0 %v283
    %308 = vmatprep.subr.mxu0 0.0
    %309 = vmatpush1.msra.mxu0 %v284
    %310 = vmatprep.subr.mxu0 0.0
    %311 = vmatpush1.msra.mxu0 %v285
    %312 = vmatprep.subr.mxu0 0.0
    %313 = vmatpush1.msra.mxu0 %v286
    %314 = vmatprep.subr.mxu0 0.0
    %315 = vmatpush1.msra.mxu0 %v287
    %316 = vmatprep.subr.mxu0 0.0
    %317 = vmatpush1.msra.mxu0 %v288
    %318 = vmatprep.subr.mxu0 0.0
    %319 = vmatpush1.msra.mxu0 %v289
    %320 = vmatprep.subr.mxu0 0.0
    %321 = vmatpush1.msra.mxu0 %v290
    %322 = vmatprep.subr.mxu0 0.0
    %323 = vmatpush1.msra.mxu0 %v291
    %324 = vmatprep.subr.mxu0 0.0
    %325 = vmatpush1.msra.mxu0 %v292
    %326 = vmatprep.subr.mxu0 0.0
    %327 = vmatpush1.msra.mxu0 %v293
    %328 = vmatprep.subr.mxu0 0.0
    %329 = vmatpush1.msra.mxu0 %v294
    %330 = vmatprep.subr.mxu0 0.0
    %331 = vmatpush1.msra.mxu0 %v295
    %332 = vmatprep.subr.mxu0 0.0
    %333 = vmatpush1.msra.mxu0 %v296
    %334 = vmatprep.subr.mxu0 0.0
    %335 = vmatpush1.msra.mxu0 %v297
    %336 = vmatprep.subr.mxu0 0.0
    %337 = vmatpush1.msra.mxu0 %v298
    %338 = vmatprep.subr.mxu0 0.0
    %339 = vmatpush1.msra.mxu0 0.0
    %340 = vmatprep.subr.mxu0 0.0
    %341 = vmatpush1.msra.mxu0 0.0
    %342 = vmatprep.subr.mxu0 0.0
    %343 = vmatpush1.msra.mxu0 0.0
    %344 = vmatprep.subr.mxu0 0.0
    %345 = vmatpush1.msra.mxu0 0.0
    %346 = vmatprep.subr.mxu0 0.0
    %347 = vmatpush1.msra.mxu0 0.0
    %348 = vmatprep.subr.mxu0 0.0
    %349 = vmatpush1.msra.mxu0 0.0
    %350 = vmatprep.subr.mxu0 0.0
    %351 = vmatpush1.msra.mxu0 0.0
    %352 = vmatprep.subr.mxu0 0.0
    %353 = vmatpush1.msra.mxu0 0.0
    %354 = vmatprep.subr.mxu0 0.0
    %355 = vmatpush1.msra.mxu0 0.0
    %356 = vmatprep.subr.mxu0 0.0
    %357 = vmatpush1.msra.mxu0 0.0
    %358 = vmatprep.subr.mxu0 0.0
    %359 = vmatpush1.msra.mxu0 0.0
    %360 = vmatprep.subr.mxu0 0.0
    %361 = vmatpush1.msra.mxu0 0.0
    %362 = vmatprep.subr.mxu0 0.0
    %363 = vmatpush1.msra.mxu0 0.0
    %364 = vmatprep.subr.mxu0 0.0
    %365 = vmatpush1.msra.mxu0 0.0
    %366 = vmatprep.subr.mxu0 0.0
    %367 = vmatpush1.msra.mxu0 0.0
    %368 = vmatprep.subr.mxu0 0.0
    %369 = vmatpush1.msra.mxu0 0.0
    %370 = vmatprep.mubr.f32.mxu0 0.0
    %371 = vmatmul.mubr.f32.gmra.mrb[0].mxu0 %v254
    %v372 = vpop.f32.mrb[0].mxu0
    %v373 = vadd.f32 %v304, %v372
    %v374 = vpop.f32.mrb[0].mxu0
    %375 = vmatprep.mubr.f32.mxu0 0.0
    %376 = vmatmul.mubr.f32.gmra.mrb[0].mxu0 %v256
    %v377 = vpop.f32.mrb[0].mxu0
    %v378 = vadd.f32 %v304, %v377
    %v379 = vpop.f32.mrb[0].mxu0
    %380 = vmatprep.mubr.f32.mxu0 0.0
    %381 = vmatmul.mubr.f32.gmra.mrb[0].mxu0 %v258
    %v382 = vpop.f32.mrb[0].mxu0
    %v383 = vadd.f32 %v304, %v382
    %v384 = vpop.f32.mrb[0].mxu0
    %385 = vmatprep.mubr.f32.mxu0 0.0
    %386 = vmatmul.mubr.f32.gmra.mrb[0].mxu0 %v260
    %v387 = vpop.f32.mrb[0].mxu0
    %v388 = vadd.f32 %v304, %v387
    %v389 = vpop.f32.mrb[0].mxu0
    %390 = vmatprep.mubr.f32.mxu0 0.0
    %391 = vmatmul.mubr.f32.gmra.mrb[0].mxu0 %v262
    %v392 = vpop.f32.mrb[0].mxu0
    %v393 = vadd.f32 %v304, %v392
    %v394 = vpop.f32.mrb[0].mxu0
    %395 = vmatprep.mubr.f32.mxu0 0.0
    %396 = vmatmul.mubr.f32.gmra.mrb[0].mxu0 %v264
    %v397 = vpop.f32.mrb[0].mxu0
    %v398 = vadd.f32 %v304, %v397
    %v399 = vpop.f32.mrb[0].mxu0
    %400 = vmatprep.mubr.f32.mxu0 0.0
    %401 = vmatmul.mubr.f32.gmra.mrb[0].mxu0 %v266
    %v402 = vpop.f32.mrb[0].mxu0
    %v403 = vadd.f32 %v304, %v402
    %v404 = vpop.f32.mrb[0].mxu0
    %405 = vmatprep.mubr.f32.mxu0 0.0
    %406 = vmatmul.mubr.f32.gmra.mrb[0].mxu0 %v268
    %v407 = vpop.f32.mrb[0].mxu0
    %v408 = vadd.f32 %v304, %v407
    %v409 = vpop.f32.mrb[0].mxu0
    %410 = vmatprep.mubr.f32.mxu0 0.0
    %411 = vmatmul.mubr.f32.gmra.mrb[0].mxu0 %v270
    %v412 = vpop.f32.mrb[0].mxu0
    %v413 = vadd.f32 %v304, %v412
    %v414 = vpop.f32.mrb[0].mxu0
    %415 = vmatprep.mubr.f32.mxu0 0.0
    %416 = vmatmul.mubr.f32.gmra.mrb[0].mxu0 %v272
    %v417 = vpop.f32.mrb[0].mxu0
    %v418 = vadd.f32 %v304, %v417
    %v419 = vpop.f32.mrb[0].mxu0
    %420 = vdwg.mxu0
    %v421 = vxor.u32 %v373, 2147483648
    %v422 = vxor.u32 %v378, 2147483648
    %v423 = vxor.u32 %v383, 2147483648
    %v424 = vxor.u32 %v388, 2147483648
    %v425 = vxor.u32 %v393, 2147483648
    %v426 = vxor.u32 %v398, 2147483648
    %v427 = vxor.u32 %v403, 2147483648
    %v428 = vxor.u32 %v408, 2147483648
    %v429 = vxor.u32 %v413, 2147483648
    %v430 = vxor.u32 %v418, 2147483648
    %v431 = vmul.f32 %v421, 1.442695
    %v432 = vpow.pop %v431
    %v433 = vmul.f32 %v422, 1.442695
    %v434 = vpow.pop %v433
    %v435 = vmul.f32 %v423, 1.442695
    %v436 = vpow.pop %v435
    %v437 = vmul.f32 %v424, 1.442695
    %v438 = vpow.pop %v437
    %v439 = vmul.f32 %v425, 1.442695
    %v440 = vpow.pop %v439
    %v441 = vmul.f32 %v426, 1.442695
    %v442 = vpow.pop %v441
    %v443 = vmul.f32 %v427, 1.442695
    %v444 = vpow.pop %v443
    %v445 = vmul.f32 %v428, 1.442695
    %v446 = vpow.pop %v445
    %v447 = vmul.f32 %v429, 1.442695
    %v448 = vpow.pop %v447
    %v449 = vmul.f32 %v430, 1.442695
    %v450 = vpow.pop %v449
    %v451 = vadd.f32 %v432, 1.0
    %v452 = vadd.f32 %v434, 1.0
    %v453 = vadd.f32 %v436, 1.0
    %v454 = vadd.f32 %v438, 1.0
    %v455 = vadd.f32 %v440, 1.0
    %v456 = vadd.f32 %v442, 1.0
    %v457 = vadd.f32 %v444, 1.0
    %v458 = vadd.f32 %v446, 1.0
    %v459 = vadd.f32 %v448, 1.0
    %v460 = vadd.f32 %v450, 1.0
    %v461 = vrcp.pop %v451
    %v462 = vmul.f32 1.0, %v461
    %v463 = vrcp.pop %v452
    %v464 = vmul.f32 1.0, %v463
    %v465 = vrcp.pop %v453
    %v466 = vmul.f32 1.0, %v465
    %v467 = vrcp.pop %v454
    %v468 = vmul.f32 1.0, %v467
    %v469 = vrcp.pop %v455
    %v470 = vmul.f32 1.0, %v469
    %v471 = vrcp.pop %v456
    %v472 = vmul.f32 1.0, %v471
    %v473 = vrcp.pop %v457
    %v474 = vmul.f32 1.0, %v473
    %v475 = vrcp.pop %v458
    %v476 = vmul.f32 1.0, %v475
    %v477 = vrcp.pop %v459
    %v478 = vmul.f32 1.0, %v477
    %v479 = vrcp.pop %v460
    %v480 = vmul.f32 1.0, %v479
    %481 = vst [vmem:[#allocation9] sm:$0xff] %v462
    %482 = vst [vmem:[#allocation9 + $0x8] sm:$0xff] %v464
    %483 = vst [vmem:[#allocation9 + $0x10] sm:$0xff] %v466
    %484 = vst [vmem:[#allocation9 + $0x18] sm:$0xff] %v468
    %485 = vst [vmem:[#allocation9 + $0x20] sm:$0xff] %v470
    %486 = vst [vmem:[#allocation9 + $0x28] sm:$0xff] %v472
    %487 = vst [vmem:[#allocation9 + $0x30] sm:$0xff] %v474
    %488 = vst [vmem:[#allocation9 + $0x38] sm:$0xff] %v476
    %489 = vst [vmem:[#allocation9 + $0x40] sm:$0xff] %v478
    %490 = vst [vmem:[#allocation9 + $0x48] sm:$0xff] %v480
    // Predicated region
    $region34: #{tpu_custom_call.1} parent=1 // pred_check
      _
    $region35: #{tpu_custom_call.1} parent=1 // pred_check_branch
      %492 = sbr.rel (0) target = $region37
    $region36: #{tpu_custom_call.1} parent=1 // pred_region
      %s494 = ssub.s32 1280, 1280
      %495 = vsyncadd [#allocation4], %s494
      %s496 = sshll.u32 [#allocation8], 4
      %s497 = int_to_ptr.vmem [resolvable:$true] %s496
      %502 = dma.vmem_to_hbm [thread:$0]  %s497, 1280, %s5, [#allocation4], 128, 128, 8
    $region37: #{tpu_custom_call.1} parent=1 // pred_fallthru
      _
    // Predicated region
    $region38: #{tpu_custom_call.1} parent=1 // pred_check
      _
    $region39: #{tpu_custom_call.1} parent=1 // pred_check_branch
      %504 = sbr.rel (0) target = $region41
    $region40: #{tpu_custom_call.1} parent=1 // pred_region
      %s506 = ssub.s32 1280, 1280
      %507 = vsyncadd [#allocation10], %s506
      %s508 = sshll.u32 [#allocation9], 4
      %s509 = int_to_ptr.vmem [resolvable:$true] %s508
      %514 = dma.vmem_to_hbm [thread:$0]  %s509, 1280, %s6, [#allocation10], 128, 128, 8
    $region41: #{tpu_custom_call.1} parent=1 // pred_fallthru
      _
    // Predicated region
    $region42: #{tpu_custom_call.1} parent=1 // pred_check
      _
    $region43: #{tpu_custom_call.1} parent=1 // pred_check_branch
      %516 = sbr.rel (0) target = $region45
    $region44: #{tpu_custom_call.1} parent=1 // pred_region
      %517 = dma.done [#allocation4], 1280
    $region45: #{tpu_custom_call.1} parent=1 // pred_fallthru
      _
    // Predicated region
    $region46: #{tpu_custom_call.1} parent=1 // pred_check
      _
    $region47: #{tpu_custom_call.1} parent=1 // pred_check_branch
      %519 = sbr.rel (0) target = $region49
    $region48: #{tpu_custom_call.1} parent=1 // pred_region
      %520 = dma.done [#allocation10], 1280
    $region49: #{tpu_custom_call.1} parent=1 // pred_fallthru
      _
    %521 = vsyncpa [#allocation3], 1
    %522 = vsyncpa [#allocation6], 1
    %523 = vsyncpa [#allocation4], 1
    %524 = vsyncpa [#allocation10], 1

</llo_original>
